<compile_context>
chip_gen: v5e
topology: v5e:2x2
jax: 0.10.0
libtpu: 0.0.40
codegen_flags: <defaults>
</compile_context>

<pallas_src>
import math

import jax
import jax.numpy as jnp
from jax import lax
from jax.experimental import pallas as pl
from jax.experimental.pallas import tpu as pltpu


def _round_up(n: int, m: int) -> int:
    return ((n + m - 1) // m) * m


def make_policy_kernel(action_bound: float, log_std_min: float, log_std_max: float,
                       act_dim: int, pack: int):
    half_log2pi = 0.5 * math.log(2.0 * math.pi)

    def kernel(x_ref, w1_ref, b1_ref, wh_ref, bh_ref, eps_ref, out_ref):
        # fc1 + ReLU : bf16 MXU operands, f32 accumulation
        h = jnp.dot(x_ref[...], w1_ref[...], preferred_element_type=jnp.float32)
        h = jnp.maximum(h + b1_ref[...], 0.0)                       # (TB, HID_pad) f32

        # fused [mu | log_std] heads in f32 (tiny matmul; avoids the ~11x bf16-error
        # amplification through the log_std rescale + exp), lane-dense (TB, 2*pack)
        r = jnp.dot(h, wh_ref[...], preferred_element_type=jnp.float32) + bh_ref[...]
        mu = r[:, :pack]                                            # vreg-aligned slices
        ls = jnp.tanh(r[:, pack:])
        log_std = log_std_min + 0.5 * (log_std_max - log_std_min) * (ls + 1.0)
        std = jnp.exp(log_std)

        # reparameterized sample (padded lanes: mu = 0, eps = 0 -> x_t = 0, pi = 0)
        eps = eps_ref[...].astype(jnp.float32)                      # (TB, pack)
        x_t = mu + std * eps
        pi = jnp.tanh(x_t)

        # Normal(mu, std).log_prob(x_t) = -0.5*eps^2 - log_std - 0.5*log(2*pi)
        log_prob = -0.5 * eps * eps - log_std - half_log2pi
        # stable tanh-squash correction reusing pi:
        #   log(1 - tanh(x)^2) = 2 * (log1p(|tanh(x)|) - |x|)
        # argument of the log is in [1, 2] so plain log has no cancellation issue.
        log_pi = log_prob - 2.0 * (jnp.log(1.0 + jnp.abs(pi)) - jnp.abs(x_t))

        # mask out the padded action lanes before the lane-reduction
        lane = lax.broadcasted_iota(jnp.int32, (log_pi.shape[0], pack), 1)
        logpi_sum = jnp.sum(jnp.where(lane < act_dim, log_pi, 0.0),
                            axis=-1, keepdims=True)                 # (TB, 1)

        pi_scaled = pi * action_bound                               # padded lanes are exactly 0
        # packed slab: lanes [0, act) = pi*bound, lane act = sum(log_pi), rest 0
        out_ref[...] = jnp.where(lane == act_dim,
                                 jnp.broadcast_to(logpi_sum, pi_scaled.shape),
                                 pi_scaled)

    return kernel


def policy_forward(x, params, eps, *, action_bound,
                   log_std_min=-20.0, log_std_max=2.0, batch_tile=512):
    B, obs_dim = x.shape
    hid = params["w1"].shape[1]
    act = params["wmu"].shape[1]

    hid_p = _round_up(hid, 128)             # lane-pad hidden dim (MXU/VPU native)
    pack = _round_up(act + 1, 128)          # packed output lane width: [pi | log_pi | 0]

    # Balanced batch tiles:
    #   * n_tiles >= ceil(B / batch_tile) keeps tb <= batch_tile
    #   * n_tiles >= 2 gives >= 2 grid steps whenever B > 8, so "parallel" can split
    #     across v7x's two TensorCores (harmless grid-of-1 for tiny B)
    #   * tb = round_up(ceil(B / n_tiles), 8) avoids pad blow-up (B=600 -> tb=304)
    n_tiles = max(2, pl.cdiv(B, batch_tile))
    tb = _round_up(pl.cdiv(B, n_tiles), 8)
    b_p = _round_up(B, tb)
    grid = b_p // tb

    f32, bf16 = jnp.float32, jnp.bfloat16

    # ---- weights: pad to hardware-native shapes; fc1 in bf16, fused head in f32
    w1 = jnp.pad(params["w1"], ((0, 0), (0, hid_p - hid))).astype(bf16)
    b1 = jnp.pad(params["b1"], ((0, 0), (0, hid_p - hid))).astype(f32)
    wmu = jnp.pad(params["wmu"], ((0, hid_p - hid), (0, pack - act)))
    wls = jnp.pad(params["wls"], ((0, hid_p - hid), (0, pack - act)))
    w_head = jnp.concatenate([wmu, wls], axis=1).astype(f32)        # (hid_p, 2*pack)
    bmu = jnp.pad(params["bmu"], ((0, 0), (0, pack - act)))
    bls = jnp.pad(params["bls"], ((0, 0), (0, pack - act)))
    b_head = jnp.concatenate([bmu, bls], axis=1).astype(f32)        # (1, 2*pack)

    # ---- activations: pad batch to the tile; eps streamed as bf16 (halves HBM bytes)
    xp = jnp.pad(x, ((0, b_p - B), (0, 0))).astype(bf16)
    ep = jnp.pad(eps, ((0, b_p - B), (0, pack - act))).astype(bf16)

    kernel = make_policy_kernel(action_bound, log_std_min, log_std_max, act, pack)

    flops = 2 * b_p * (obs_dim * hid_p + hid_p * 2 * pack)
    transcendentals = 4 * b_p * pack      # tanh(log_std), exp(std), tanh(pi), log(1+|pi|)
    bytes_accessed = (xp.size * 2 + w1.size * 2 + b1.size * 4 + w_head.size * 4
                      + b_head.size * 4 + ep.size * 2 + b_p * pack * 4)

    packed = pl.pallas_call(
        kernel,
        out_shape=jax.ShapeDtypeStruct((b_p, pack), f32),
        grid=(grid,),
        in_specs=[
            pl.BlockSpec((tb, obs_dim), lambda i: (i, 0)),      # x tile (pipelined)
            pl.BlockSpec((obs_dim, hid_p), lambda i: (0, 0)),   # weights stay VMEM-resident
            pl.BlockSpec((1, hid_p), lambda i: (0, 0)),
            pl.BlockSpec((hid_p, 2 * pack), lambda i: (0, 0)),
            pl.BlockSpec((1, 2 * pack), lambda i: (0, 0)),
            pl.BlockSpec((tb, pack), lambda i: (i, 0)),         # eps tile (pipelined, bf16)
        ],
        out_specs=pl.BlockSpec((tb, pack), lambda i: (i, 0)),
        compiler_params=pltpu.CompilerParams(
            dimension_semantics=("parallel",),                  # megacore split on v7x
        ),
        cost_estimate=pl.CostEstimate(flops=flops,
                                      transcendentals=transcendentals,
                                      bytes_accessed=bytes_accessed),
    )(xp, w1, b1, w_head, b_head, ep)

    pi = packed[:B, :act]
    log_pi = packed[:B, act:act + 1]
    return pi, log_pi


def policy_forward_ref(x, params, eps, *, action_bound,
                       log_std_min=-20.0, log_std_max=2.0):
    """Pure-JAX f32 reference mirroring PolicyNet_.forward (for validation)."""
    h = jnp.maximum(x @ params["w1"] + params["b1"], 0.0)
    mu = h @ params["wmu"] + params["bmu"]
    ls = jnp.tanh(h @ params["wls"] + params["bls"])
    log_std = log_std_min + 0.5 * (log_std_max - log_std_min) * (ls + 1.0)
    std = jnp.exp(log_std)
    x_t = mu + std * eps
    pi = jnp.tanh(x_t)
    log_prob = -0.5 * eps * eps - log_std - 0.5 * math.log(2.0 * math.pi)
    log_pi = log_prob - jnp.log(1.0 - pi * pi + 1e-7)
    return pi * action_bound, jnp.sum(log_pi, axis=-1, keepdims=True)


def init_params(key, obs_dim, hidden_dim, action_dim, init_w=0.003):
    k1, k2, k3, k4, k5, k6 = jax.random.split(key, 6)
    # fc1: PyTorch default init ~ U(-1/sqrt(fan_in), 1/sqrt(fan_in))
    bound1 = 1.0 / math.sqrt(obs_dim)
    w1 = jax.random.uniform(k1, (obs_dim, hidden_dim), jnp.float32, -bound1, bound1)
    b1 = jax.random.uniform(k2, (1, hidden_dim), jnp.float32, -bound1, bound1)
    # mu / log_std heads: init_layer_uniform -> U(-init_w, init_w)
    wmu = jax.random.uniform(k3, (hidden_dim, action_dim), jnp.float32, -init_w, init_w)
    bmu = jax.random.uniform(k4, (1, action_dim), jnp.float32, -init_w, init_w)
    wls = jax.random.uniform(k5, (hidden_dim, action_dim), jnp.float32, -init_w, init_w)
    bls = jax.random.uniform(k6, (1, action_dim), jnp.float32, -init_w, init_w)
    return {"w1": w1, "b1": b1, "wmu": wmu, "bmu": bmu, "wls": wls, "bls": bls}


if __name__ == "__main__":
    # small shapes consistent with the module's MLP forward
    B, OBS, HID, ACT = 4, 16, 32, 8
    ACTION_BOUND = 2.0

    key = jax.random.PRNGKey(0)
    k_param, k_x, k_eps = jax.random.split(key, 3)

    params = init_params(k_param, OBS, HID, ACT)
    x = jax.random.normal(k_x, (B, OBS), jnp.float32)
    eps = jax.random.normal(k_eps, (B, ACT), jnp.float32)   # rsample noise

    pi, log_pi = policy_forward(x, params, eps, action_bound=ACTION_BOUND)
    jax.block_until_ready((pi, log_pi))

    # sanity + numerical checks against a pure-JAX f32 reference
    # (feed the reference the same bf16-rounded eps that the kernel consumes)
    eps_q = eps.astype(jnp.bfloat16).astype(jnp.float32)
    pi_ref, lp_ref = policy_forward_ref(x, params, eps_q, action_bound=ACTION_BOUND)
    assert pi.shape == (B, ACT) and log_pi.shape == (B, 1)
    assert bool(jnp.all(jnp.isfinite(pi))) and bool(jnp.all(jnp.isfinite(log_pi)))
    assert bool(jnp.all(jnp.abs(pi) <= ACTION_BOUND + 1e-5))
    assert bool(jnp.allclose(pi, pi_ref, rtol=5e-2, atol=5e-2))
    assert bool(jnp.allclose(log_pi, lp_ref, rtol=5e-2, atol=5e-2))

    print("KERNEL_OK")
</pallas_src>

<mosaic_0001>
module attributes {stable_mosaic.version = 11 : i64} {
  func.func @kernel(%arg0: i32, %arg1: memref<8x16xbf16, #tpu.memory_space<vmem>>, %arg2: memref<16x128xbf16, #tpu.memory_space<vmem>>, %arg3: memref<1x128xf32, #tpu.memory_space<vmem>>, %arg4: memref<128x256xf32, #tpu.memory_space<vmem>>, %arg5: memref<1x256xf32, #tpu.memory_space<vmem>>, %arg6: memref<8x128xbf16, #tpu.memory_space<vmem>>, %arg7: memref<8x128xf32, #tpu.memory_space<vmem>>) attributes {dimension_semantics = [#tpu.dimension_semantics<parallel>], iteration_bounds = array<i64: 1>, scalar_prefetch = 0 : i64, scratch_operands = 0 : i64, tpu.core_type = #tpu.core_type<tc>, window_params = [{transform_indices = @transform_0, window_bounds = array<i64: 8, 16>}, {pipeline_mode = #tpu.pipeline_mode<synchronous>, transform_indices = @transform_1, window_bounds = array<i64: 16, 128>}, {pipeline_mode = #tpu.pipeline_mode<synchronous>, transform_indices = @transform_2, window_bounds = array<i64: 1, 128>}, {pipeline_mode = #tpu.pipeline_mode<synchronous>, transform_indices = @transform_3, window_bounds = array<i64: 128, 256>}, {pipeline_mode = #tpu.pipeline_mode<synchronous>, transform_indices = @transform_4, window_bounds = array<i64: 1, 256>}, {transform_indices = @transform_5, window_bounds = array<i64: 8, 128>}, {transform_indices = @transform_6, window_bounds = array<i64: 8, 128>}]} {
    %c0 = arith.constant 0 : index
    %c0_0 = arith.constant 0 : index
    %0 = vector.load %arg1[%c0, %c0_0] : memref<8x16xbf16, #tpu.memory_space<vmem>>, vector<8x16xbf16>
    %c0_1 = arith.constant 0 : index
    %c0_2 = arith.constant 0 : index
    %1 = vector.load %arg2[%c0_1, %c0_2] : memref<16x128xbf16, #tpu.memory_space<vmem>>, vector<16x128xbf16>
    %cst = arith.constant dense<0.000000e+00> : vector<8x128xf32>
    %2 = tpu.matmul %0, %1, %cst {dimension_numbers = #tpu.dot_dimension_numbers<[1], [0], [0], [1], [0, 0, 1, 1], [], []>} : vector<8x16xbf16>, vector<16x128xbf16>, vector<8x128xf32> -> vector<8x128xf32>
    %c0_3 = arith.constant 0 : index
    %c0_4 = arith.constant 0 : index
    %3 = vector.load %arg3[%c0_3, %c0_4] : memref<1x128xf32, #tpu.memory_space<vmem>>, vector<1x128xf32>
    %4 = vector.broadcast %3 : vector<1x128xf32> to vector<8x128xf32>
    %5 = arith.addf %2, %4 : vector<8x128xf32>
    %cst_5 = arith.constant 0.000000e+00 : f32
    %6 = vector.broadcast %cst_5 : f32 to vector<8x128xf32>
    %7 = arith.maximumf %5, %6 : vector<8x128xf32>
    %c0_6 = arith.constant 0 : index
    %c0_7 = arith.constant 0 : index
    %8 = vector.load %arg4[%c0_6, %c0_7] : memref<128x256xf32, #tpu.memory_space<vmem>>, vector<128x256xf32>
    %cst_8 = arith.constant dense<0.000000e+00> : vector<8x256xf32>
    %9 = tpu.matmul %7, %8, %cst_8 {dimension_numbers = #tpu.dot_dimension_numbers<[1], [0], [0], [1], [0, 0, 1, 1], [], []>} : vector<8x128xf32>, vector<128x256xf32>, vector<8x256xf32> -> vector<8x256xf32>
    %c0_9 = arith.constant 0 : index
    %c0_10 = arith.constant 0 : index
    %10 = vector.load %arg5[%c0_9, %c0_10] : memref<1x256xf32, #tpu.memory_space<vmem>>, vector<1x256xf32>
    %11 = vector.broadcast %10 : vector<1x256xf32> to vector<8x256xf32>
    %12 = arith.addf %9, %11 : vector<8x256xf32>
    %13 = vector.extract_strided_slice %12 {offsets = [0, 0], sizes = [8, 128], strides = [1, 1]} : vector<8x256xf32> to vector<8x128xf32>
    %14 = vector.extract_strided_slice %12 {offsets = [0, 128], sizes = [8, 128], strides = [1, 1]} : vector<8x256xf32> to vector<8x128xf32>
    %15 = math.tanh %14 : vector<8x128xf32>
    %cst_11 = arith.constant 1.000000e+00 : f32
    %16 = vector.broadcast %cst_11 : f32 to vector<8x128xf32>
    %17 = arith.addf %15, %16 : vector<8x128xf32>
    %cst_12 = arith.constant 1.100000e+01 : f32
    %18 = vector.broadcast %cst_12 : f32 to vector<8x128xf32>
    %19 = arith.mulf %18, %17 : vector<8x128xf32>
    %cst_13 = arith.constant -2.000000e+01 : f32
    %20 = vector.broadcast %cst_13 : f32 to vector<8x128xf32>
    %21 = arith.addf %20, %19 : vector<8x128xf32>
    %22 = math.exp %21 : vector<8x128xf32>
    %c0_14 = arith.constant 0 : index
    %c0_15 = arith.constant 0 : index
    %23 = vector.load %arg6[%c0_14, %c0_15] : memref<8x128xbf16, #tpu.memory_space<vmem>>, vector<8x128xbf16>
    %24 = arith.extf %23 : vector<8x128xbf16> to vector<8x128xf32>
    %25 = arith.mulf %22, %24 : vector<8x128xf32>
    %26 = arith.addf %13, %25 : vector<8x128xf32>
    %27 = math.tanh %26 : vector<8x128xf32>
    %cst_16 = arith.constant -5.000000e-01 : f32
    %28 = vector.broadcast %cst_16 : f32 to vector<8x128xf32>
    %29 = arith.mulf %28, %24 : vector<8x128xf32>
    %30 = arith.mulf %29, %24 : vector<8x128xf32>
    %31 = arith.subf %30, %21 : vector<8x128xf32>
    %cst_17 = arith.constant 0.918938517 : f32
    %32 = vector.broadcast %cst_17 : f32 to vector<8x128xf32>
    %33 = arith.subf %31, %32 : vector<8x128xf32>
    %34 = math.absf %27 : vector<8x128xf32>
    %cst_18 = arith.constant 1.000000e+00 : f32
    %35 = vector.broadcast %cst_18 : f32 to vector<8x128xf32>
    %36 = arith.addf %35, %34 : vector<8x128xf32>
    %37 = math.log %36 : vector<8x128xf32>
    %38 = math.absf %26 : vector<8x128xf32>
    %39 = arith.subf %37, %38 : vector<8x128xf32>
    %cst_19 = arith.constant 2.000000e+00 : f32
    %40 = vector.broadcast %cst_19 : f32 to vector<8x128xf32>
    %41 = arith.mulf %40, %39 : vector<8x128xf32>
    %42 = arith.subf %33, %41 : vector<8x128xf32>
    %43 = tpu.iota {dimensions = array<i32: 1>} : vector<8x128xi32>
    %c8_i32 = arith.constant 8 : i32
    %44 = vector.broadcast %c8_i32 : i32 to vector<8x128xi32>
    %45 = arith.cmpi slt, %43, %44 : vector<8x128xi32>
    %cst_20 = arith.constant 0.000000e+00 : f32
    %46 = vector.broadcast %cst_20 : f32 to vector<8x128xf32>
    %47 = arith.select %45, %42, %46 : vector<8x128xi1>, vector<8x128xf32>
    %cst_21 = arith.constant dense<0.000000e+00> : vector<8xf32>
    %48 = vector.multi_reduction <add>, %47, %cst_21 [1] : vector<8x128xf32> to vector<8xf32>
    %49 = vector.shape_cast %48 : vector<8xf32> to vector<8x1xf32>
    %cst_22 = arith.constant 2.000000e+00 : f32
    %50 = vector.broadcast %cst_22 : f32 to vector<8x128xf32>
    %51 = arith.mulf %27, %50 : vector<8x128xf32>
    %c8_i32_23 = arith.constant 8 : i32
    %52 = vector.broadcast %c8_i32_23 : i32 to vector<8x128xi32>
    %53 = arith.cmpi eq, %43, %52 : vector<8x128xi32>
    %54 = vector.shape_cast %49 : vector<8x1xf32> to vector<8x1xf32>
    %55 = vector.broadcast %54 : vector<8x1xf32> to vector<8x128xf32>
    %56 = arith.select %53, %55, %51 : vector<8x128xi1>, vector<8x128xf32>
    %c0_24 = arith.constant 0 : index
    %c0_25 = arith.constant 0 : index
    %57 = vector.load %arg7[%c0_24, %c0_25] : memref<8x128xf32, #tpu.memory_space<vmem>>, vector<8x128xf32>
    tpu.vector_store %arg7[%c0_24, %c0_25], %56 {strides = array<i32>} : memref<8x128xf32, #tpu.memory_space<vmem>>, vector<8x128xf32>,
    return
  }
  func.func @transform_0(%arg0: i32) -> (i32, i32) {
    %c0_i32 = arith.constant 0 : i32
    %c0_i32_0 = arith.constant 0 : i32
    return %arg0, %c0_i32 : i32, i32
  }
  func.func @transform_1(%arg0: i32) -> (i32, i32) {
    %c0_i32 = arith.constant 0 : i32
    %c0_i32_0 = arith.constant 0 : i32
    %c0_i32_1 = arith.constant 0 : i32
    return %c0_i32, %c0_i32_0 : i32, i32
  }
  func.func @transform_2(%arg0: i32) -> (i32, i32) {
    %c0_i32 = arith.constant 0 : i32
    %c0_i32_0 = arith.constant 0 : i32
    %c0_i32_1 = arith.constant 0 : i32
    return %c0_i32, %c0_i32_0 : i32, i32
  }
  func.func @transform_3(%arg0: i32) -> (i32, i32) {
    %c0_i32 = arith.constant 0 : i32
    %c0_i32_0 = arith.constant 0 : i32
    %c0_i32_1 = arith.constant 0 : i32
    return %c0_i32, %c0_i32_0 : i32, i32
  }
  func.func @transform_4(%arg0: i32) -> (i32, i32) {
    %c0_i32 = arith.constant 0 : i32
    %c0_i32_0 = arith.constant 0 : i32
    %c0_i32_1 = arith.constant 0 : i32
    return %c0_i32, %c0_i32_0 : i32, i32
  }
  func.func @transform_5(%arg0: i32) -> (i32, i32) {
    %c0_i32 = arith.constant 0 : i32
    %c0_i32_0 = arith.constant 0 : i32
    return %arg0, %c0_i32 : i32, i32
  }
  func.func @transform_6(%arg0: i32) -> (i32, i32) {
    %c0_i32 = arith.constant 0 : i32
    %c0_i32_0 = arith.constant 0 : i32
    return %arg0, %c0_i32 : i32, i32
  }
}

</mosaic_0001>

<llo_original>
// kernel: tpu_custom_call.1
$region0: #{tpu_custom_call.1}
  #allocation0 [shape = 'u32[]', space=smem, size = 0x4, offset = 0x4, fixed_abs, tag = 'smem constant byte address 0x4 - core index']
  #allocation1 [shape = 'u32[72,128]{1,0:T(1,128)}', space=vmem, size = 0x9000, scoped, tag = 'internal scratch']
  %s0 = inlined_call_operand.hbm [shape: bf16[8,16], index: 0, kind: input, shape index: {}]
  %s1 = inlined_call_operand.hbm [shape: bf16[16,128], index: 1, kind: input, shape index: {}]
  %s2 = inlined_call_operand.hbm [shape: f32[1,128], index: 2, kind: input, shape index: {}]
  %s3 = inlined_call_operand.hbm [shape: f32[128,256], index: 3, kind: input, shape index: {}]
  %s4 = inlined_call_operand.hbm [shape: f32[1,256], index: 4, kind: input, shape index: {}]
  %s5 = inlined_call_operand.vmem [shape: bf16[8,128], index: 5, kind: input, shape index: {}]
  %s6 = inlined_call_operand.hbm [shape: f32[8,128], index: 6, kind: output, shape index: {}]
  %s7 = sld [smem:[#allocation0]]
  $region54: #{tpu_custom_call.1} parent=0
    _
  %s9 = ssub.s32 1, %s7
  %s10 = scalar_select 0, %s9, %s7
  $region1: #{tpu_custom_call.1} parent=0
    #allocation2 [shape = 'u8[2048]{0}', space=vmem, size = 0x800, scoped, tag = 'input window, operand 0, single buffered']
    #allocation3 [shape = 's32[1]{0}', space=sflag, size = 0x4, scoped, tag = 'scoped memory for tpu_custom_call.1']
    #allocation4 [shape = 's32[1]{0}', space=sflag, size = 0x4, scoped, tag = 'scoped memory for tpu_custom_call.1']
    #allocation5 [shape = 'u8[4096]{0}', space=vmem, size = 0x1000, scoped, tag = 'input window, operand 1, single buffered']
    #allocation6 [shape = 's32[1]{0}', space=sflag, size = 0x4, scoped, tag = 'scoped memory for tpu_custom_call.1']
    #allocation7 [shape = 'u8[512]{0}', space=vmem, size = 0x400, scoped, tag = 'input window, operand 2, single buffered']
    #allocation8 [shape = 'u8[131072]{0}', space=vmem, size = 0x20000, scoped, tag = 'input window, operand 3, single buffered']
    #allocation9 [shape = 's32[1]{0}', space=sflag, size = 0x4, scoped, tag = 'scoped memory for tpu_custom_call.1']
    #allocation10 [shape = 'u8[1024]{0}', space=vmem, size = 0x400, scoped, tag = 'input window, operand 4, single buffered']
    #allocation11 [shape = 'u8[4096]{0}', space=vmem, size = 0x1000, scoped, tag = 'output window, operand 0, single buffered']
    %11 = vsyncpa [#allocation3], 0
    %12 = vsyncpa [#allocation6], 0
    %13 = vsyncpa [#allocation9], 0
    %14 = vsyncpa [#allocation4], 0
    // Predicated region
    $region2: #{tpu_custom_call.1} parent=1 // pred_check
      _
    $region3: #{tpu_custom_call.1} parent=1 // pred_check_branch
      %16 = sbr.rel (0) target = $region5
    $region4: #{tpu_custom_call.1} parent=1 // pred_region
      %18 = vsyncadd [#allocation3], 0
      %s20 = sshll.u32 %s0, 4
      %s21 = int_to_ptr.hbm [resolvable:$true] %s20
      %s22 = sshll.u32 [#allocation2], 4
      %s23 = int_to_ptr.vmem [resolvable:$true] %s22
      %25 = dma.hbm_to_vmem [thread:$0]  %s21, 64, %s23, [#allocation3]
    $region5: #{tpu_custom_call.1} parent=1 // pred_fallthru
      _
    // Predicated region
    $region6: #{tpu_custom_call.1} parent=1 // pred_check
      _
    $region7: #{tpu_custom_call.1} parent=1 // pred_check_branch
      %27 = sbr.rel (0) target = $region9
    $region8: #{tpu_custom_call.1} parent=1 // pred_region
      %29 = vsyncadd [#allocation6], 0
      %s30 = sshll.u32 %s1, 4
      %s31 = int_to_ptr.hbm [resolvable:$true] %s30
      %s32 = sshll.u32 [#allocation5], 4
      %s33 = int_to_ptr.vmem [resolvable:$true] %s32
      %38 = dma.hbm_to_vmem [thread:$0]  %s31, 128, %s33, [#allocation6], 64, 64, 4
    $region9: #{tpu_custom_call.1} parent=1 // pred_fallthru
      _
    // Predicated region
    $region10: #{tpu_custom_call.1} parent=1 // pred_check
      _
    $region11: #{tpu_custom_call.1} parent=1 // pred_check_branch
      %40 = sbr.rel (0) target = $region13
    $region12: #{tpu_custom_call.1} parent=1 // pred_region
      %42 = vsyncadd [#allocation6], 0
      %s44 = sshll.u32 %s2, 4
      %s45 = int_to_ptr.hbm [resolvable:$true] %s44
      %s46 = sshll.u32 [#allocation7], 4
      %s47 = int_to_ptr.vmem [resolvable:$true] %s46
      %49 = dma.hbm_to_vmem [thread:$0]  %s45, 16, %s47, [#allocation6]
    $region13: #{tpu_custom_call.1} parent=1 // pred_fallthru
      _
    // Predicated region
    $region14: #{tpu_custom_call.1} parent=1 // pred_check
      _
    $region15: #{tpu_custom_call.1} parent=1 // pred_check_branch
      %51 = sbr.rel (0) target = $region17
    $region16: #{tpu_custom_call.1} parent=1 // pred_region
      %53 = vsyncadd [#allocation9], 0
      %s54 = sshll.u32 %s3, 4
      %s55 = int_to_ptr.hbm [resolvable:$true] %s54
      %s56 = sshll.u32 [#allocation8], 4
      %s57 = int_to_ptr.vmem [resolvable:$true] %s56
      %62 = dma.hbm_to_vmem [thread:$0]  %s55, 4096, %s57, [#allocation9], 256, 256, 16
    $region17: #{tpu_custom_call.1} parent=1 // pred_fallthru
      _
    // Predicated region
    $region18: #{tpu_custom_call.1} parent=1 // pred_check
      _
    $region19: #{tpu_custom_call.1} parent=1 // pred_check_branch
      %64 = sbr.rel (0) target = $region21
    $region20: #{tpu_custom_call.1} parent=1 // pred_region
      %66 = vsyncadd [#allocation9], 0
      %s68 = sshll.u32 %s4, 4
      %s69 = int_to_ptr.hbm [resolvable:$true] %s68
      %s70 = sshll.u32 [#allocation10], 4
      %s71 = int_to_ptr.vmem [resolvable:$true] %s70
      %73 = dma.hbm_to_vmem [thread:$0]  %s69, 32, %s71, [#allocation9]
    $region21: #{tpu_custom_call.1} parent=1 // pred_fallthru
      _
    // Predicated region
    $region22: #{tpu_custom_call.1} parent=1 // pred_check
      _
    $region23: #{tpu_custom_call.1} parent=1 // pred_check_branch
      %75 = sbr.rel (0) target = $region25
    $region24: #{tpu_custom_call.1} parent=1 // pred_region
      _
    $region25: #{tpu_custom_call.1} parent=1 // pred_fallthru
      _
    // Predicated region
    $region26: #{tpu_custom_call.1} parent=1 // pred_check
      _
    $region27: #{tpu_custom_call.1} parent=1 // pred_check_branch
      %77 = sbr.rel (0) target = $region29
    $region28: #{tpu_custom_call.1} parent=1 // pred_region
      %79 = dma.done [#allocation3], 64
    $region29: #{tpu_custom_call.1} parent=1 // pred_fallthru
      _
    // Predicated region
    $region30: #{tpu_custom_call.1} parent=1 // pred_check
      _
    $region31: #{tpu_custom_call.1} parent=1 // pred_check_branch
      %81 = sbr.rel (0) target = $region33
    $region32: #{tpu_custom_call.1} parent=1 // pred_region
      %83 = dma.done [#allocation6], 128
    $region33: #{tpu_custom_call.1} parent=1 // pred_fallthru
      _
    // Predicated region
    $region34: #{tpu_custom_call.1} parent=1 // pred_check
      _
    $region35: #{tpu_custom_call.1} parent=1 // pred_check_branch
      %85 = sbr.rel (0) target = $region37
    $region36: #{tpu_custom_call.1} parent=1 // pred_region
      %87 = dma.done [#allocation6], 16
    $region37: #{tpu_custom_call.1} parent=1 // pred_fallthru
      _
    // Predicated region
    $region38: #{tpu_custom_call.1} parent=1 // pred_check
      _
    $region39: #{tpu_custom_call.1} parent=1 // pred_check_branch
      %89 = sbr.rel (0) target = $region41
    $region40: #{tpu_custom_call.1} parent=1 // pred_region
      %91 = dma.done [#allocation9], 4096
    $region41: #{tpu_custom_call.1} parent=1 // pred_fallthru
      _
    // Predicated region
    $region42: #{tpu_custom_call.1} parent=1 // pred_check
      _
    $region43: #{tpu_custom_call.1} parent=1 // pred_check_branch
      %93 = sbr.rel (0) target = $region45
    $region44: #{tpu_custom_call.1} parent=1 // pred_region
      %95 = dma.done [#allocation9], 32
    $region45: #{tpu_custom_call.1} parent=1 // pred_fallthru
      _
    %v97 = vld [vmem:[#allocation2] sm:$0xf]
    %v98 = vld [vmem:[#allocation5] sm:$0xf]
    %v99 = vld [vmem:[#allocation5 + $0x4] sm:$0xf]
    %v100 = vld [vmem:[#allocation7] sm:$0x1]
    %v102 = vperm.slane %v100, 0
    %v106 = vunpack.c.l.b16 %v98
    %v107 = vunpack.c.l.b16 %v99
    %v108 = vpack.c.b16 %v107, %v106
    %vm110 = vcmask 130048
    %v112 = vsel %vm110, %v97, 0
    %114 = vmatpush.bf16.msra.mxu0 0
    %115 = vmatpush.bf16.msra.mxu0 0
    %116 = vmatpush.bf16.msra.mxu0 0
    %117 = vmatpush.bf16.msra.mxu0 0
    %118 = vmatpush.bf16.msra.mxu0 0
    %119 = vmatpush.bf16.msra.mxu0 0
    %120 = vmatpush.bf16.msra.mxu0 0
    %121 = vmatpush.bf16.msra.mxu0 %v108
    %122 = vmatmul.bf16.gmra.mxu0 %v112
    %v123 = vpop.f32.mrf.mxu0
    %v124 = vadd.f32 %v102, %v123
    %v125 = vpop.f32.mrf.mxu0
    %126 = vdwg.mxu0
    %v127 = vmax.f32 %v124, 0.0
    %v128 = vld [vmem:[#allocation8] sm:$0xff]
    %v129 = vld [vmem:[#allocation8 + $0x8] sm:$0xff]
    %v130 = vld [vmem:[#allocation8 + $0x10] sm:$0xff]
    %v131 = vld [vmem:[#allocation8 + $0x18] sm:$0xff]
    %v132 = vld [vmem:[#allocation8 + $0x20] sm:$0xff]
    %v133 = vld [vmem:[#allocation8 + $0x28] sm:$0xff]
    %v134 = vld [vmem:[#allocation8 + $0x30] sm:$0xff]
    %v135 = vld [vmem:[#allocation8 + $0x38] sm:$0xff]
    %v136 = vld [vmem:[#allocation8 + $0x40] sm:$0xff]
    %v137 = vld [vmem:[#allocation8 + $0x48] sm:$0xff]
    %v138 = vld [vmem:[#allocation8 + $0x50] sm:$0xff]
    %v139 = vld [vmem:[#allocation8 + $0x58] sm:$0xff]
    %v140 = vld [vmem:[#allocation8 + $0x60] sm:$0xff]
    %v141 = vld [vmem:[#allocation8 + $0x68] sm:$0xff]
    %v142 = vld [vmem:[#allocation8 + $0x70] sm:$0xff]
    %v143 = vld [vmem:[#allocation8 + $0x78] sm:$0xff]
    %v144 = vld [vmem:[#allocation8 + $0x80] sm:$0xff]
    %v145 = vld [vmem:[#allocation8 + $0x88] sm:$0xff]
    %v146 = vld [vmem:[#allocation8 + $0x90] sm:$0xff]
    %v147 = vld [vmem:[#allocation8 + $0x98] sm:$0xff]
    %v148 = vld [vmem:[#allocation8 + $0xa0] sm:$0xff]
    %v149 = vld [vmem:[#allocation8 + $0xa8] sm:$0xff]
    %v150 = vld [vmem:[#allocation8 + $0xb0] sm:$0xff]
    %v151 = vld [vmem:[#allocation8 + $0xb8] sm:$0xff]
    %v152 = vld [vmem:[#allocation8 + $0xc0] sm:$0xff]
    %v153 = vld [vmem:[#allocation8 + $0xc8] sm:$0xff]
    %v154 = vld [vmem:[#allocation8 + $0xd0] sm:$0xff]
    %v155 = vld [vmem:[#allocation8 + $0xd8] sm:$0xff]
    %v156 = vld [vmem:[#allocation8 + $0xe0] sm:$0xff]
    %v157 = vld [vmem:[#allocation8 + $0xe8] sm:$0xff]
    %v158 = vld [vmem:[#allocation8 + $0xf0] sm:$0xff]
    %v159 = vld [vmem:[#allocation8 + $0xf8] sm:$0xff]
    %v160 = vld [vmem:[#allocation10] sm:$0x3]
    %v162 = vperm.slane %v160, 0
    %v163 = vperm.slane %v160, 1
    %166 = vmatpush.msra.mxu0 %v158
    %167 = vmatpush.msra.mxu0 %v156
    %168 = vmatpush.msra.mxu0 %v154
    %169 = vmatpush.msra.mxu0 %v152
    %170 = vmatpush.msra.mxu0 %v150
    %171 = vmatpush.msra.mxu0 %v148
    %172 = vmatpush.msra.mxu0 %v146
    %173 = vmatpush.msra.mxu0 %v144
    %174 = vmatpush.msra.mxu0 %v142
    %175 = vmatpush.msra.mxu0 %v140
    %176 = vmatpush.msra.mxu0 %v138
    %177 = vmatpush.msra.mxu0 %v136
    %178 = vmatpush.msra.mxu0 %v134
    %179 = vmatpush.msra.mxu0 %v132
    %180 = vmatpush.msra.mxu0 %v130
    %181 = vmatpush.msra.mxu0 %v128
    %182 = vmatmul.f32.gmra.mxu0 %v127
    %v183 = vpop.f32.mrf.mxu0
    %v184 = vadd.f32 %v162, %v183
    %185 = vdwg.mxu0
    %186 = vmatpush.msra.mxu0 %v159
    %187 = vmatpush.msra.mxu0 %v157
    %188 = vmatpush.msra.mxu0 %v155
    %189 = vmatpush.msra.mxu0 %v153
    %190 = vmatpush.msra.mxu0 %v151
    %191 = vmatpush.msra.mxu0 %v149
    %192 = vmatpush.msra.mxu0 %v147
    %193 = vmatpush.msra.mxu0 %v145
    %194 = vmatpush.msra.mxu0 %v143
    %195 = vmatpush.msra.mxu0 %v141
    %196 = vmatpush.msra.mxu0 %v139
    %197 = vmatpush.msra.mxu0 %v137
    %198 = vmatpush.msra.mxu0 %v135
    %199 = vmatpush.msra.mxu0 %v133
    %200 = vmatpush.msra.mxu0 %v131
    %201 = vmatpush.msra.mxu0 %v129
    %202 = vmatmul.f32.gmra.mxu0 %v127
    %v203 = vpop.f32.mrf.mxu0
    %v204 = vadd.f32 %v163, %v203
    %205 = vdwg.mxu0
    %v206 = vtanh.pop %v204
    %v207 = vadd.f32 %v206, 1.0
    %v208 = vmul.f32 %v207, 11.0
    %v209 = vadd.f32 %v208, -20.0
    %v210 = vmul.f32 %v209, 1.442695
    %v211 = vpow.pop %v210
    %v212 = vld [vmem:[%s5] sm:$0xf]
    %v213 = vunpack.c.l.bf16 %v212
    %v214 = vmul.f32 %v211, %v213
    %v215 = vadd.f32 %v184, %v214
    %v216 = vtanh.pop %v215
    %v217 = vmul.f32 %v213, -0.5
    %v218 = vmul.f32 %v217, %v213
    %v219 = vsub.f32 %v218, %v209
    %v220 = vsub.f32 %v219, 0.9189385
    %v221 = vand.u32 2147483647, %v216
    %v222 = vadd.f32 %v221, 1.0
    %v223 = vlog2.pop %v222
    %v224 = vmul.f32 %v223, 0.6931472
    %v225 = vand.u32 2147483647, %v215
    %v226 = vsub.f32 %v224, %v225
    %v227 = vmul.f32 %v226, 2.0
    %v228 = vsub.f32 %v220, %v227
    %v229 = vlaneseq
    %v230 = vand.u32 %v229, 127
    %vm231 = vcmp.lt.s32.totalorder %v230, 8
    %v232 = vsel %vm231, %v228, 0.0
    %233 = vadd.xlane.f32.xlu0 %v232
    %v234 = vpop.xlane.xlu0 %233
    %v235 = vmul.f32 %v216, 2.0
    %vm236 = vcmp.eq.s32.totalorder %v230, 8
    %v237 = vsel %vm236, %v234, %v235
    %238 = vst [vmem:[#allocation11] sm:$0xff] %v237
    // Predicated region
    $region46: #{tpu_custom_call.1} parent=1 // pred_check
      _
    $region47: #{tpu_custom_call.1} parent=1 // pred_check_branch
      %240 = sbr.rel (0) target = $region49
    $region48: #{tpu_custom_call.1} parent=1 // pred_region
      %242 = vsyncadd [#allocation4], 0
      %s244 = sshll.u32 [#allocation11], 4
      %s245 = int_to_ptr.vmem [resolvable:$true] %s244
      %s246 = sshll.u32 %s6, 4
      %s247 = int_to_ptr.hbm [resolvable:$true] %s246
      %249 = dma.vmem_to_hbm [thread:$0]  %s245, 128, %s247, [#allocation4]
    $region49: #{tpu_custom_call.1} parent=1 // pred_fallthru
      _
    // Predicated region
    $region50: #{tpu_custom_call.1} parent=1 // pred_check
      _
    $region51: #{tpu_custom_call.1} parent=1 // pred_check_branch
      %251 = sbr.rel (0) target = $region53
    $region52: #{tpu_custom_call.1} parent=1 // pred_region
      %253 = dma.done [#allocation4], 128
    $region53: #{tpu_custom_call.1} parent=1 // pred_fallthru
      _
    %254 = vsyncpa [#allocation3], 1
    %255 = vsyncpa [#allocation6], 1
    %256 = vsyncpa [#allocation9], 1
    %257 = vsyncpa [#allocation4], 1

</llo_original>
